<compile_context>
chip_gen: v6e
topology: v6e:2x2x1
jax: 0.10.0
libtpu: 0.0.40
codegen_flags: <defaults>
</compile_context>

<pallas_src>
import functools
import math

import jax
import jax.numpy as jnp
from jax import lax
from jax.experimental import pallas as pl
from jax.experimental.pallas import tpu as pltpu


def _round_up(x: int, m: int) -> int:
    return (x + m - 1) // m * m


def _gaussian_kernel_kernel(src_ref, tar_ref, nx2_ref, ny2_ref, out_ref, *,
                            two_c, log_amp, amp_mul):
    s = src_ref[...]                      # (tm, F)
    t = tar_ref[...]                      # (tn, F)

    # Cross term on the MXU, NT form (contract last dim of both operands),
    # f32 accumulation regardless of input dtype.
    xy = lax.dot_general(
        s, t,
        dimension_numbers=(((1,), (1,)), ((), ())),
        preferred_element_type=jnp.float32,
    )                                      # (tm, tn)

    # exponent = -c*||x-y||^2 + ln(A) = 2c*x.y + (-c*|x|^2) + (-c*|y|^2) + ln(A)
    e = two_c * xy + nx2_ref[...] + ny2_ref[...] + log_amp
    # ||x-y||^2 >= 0 mathematically; clamp rounding residue of the expansion.
    e = jnp.minimum(e, log_amp)
    r = jnp.exp(e)
    if amp_mul is not None:                # only taken when amplitude <= 0 (rare)
        r = amp_mul * r
    out_ref[...] = r.astype(out_ref.dtype)


def gaussian_kernel(src_feats: jax.Array, tar_feats: jax.Array,
                    amplitude: float, sigma: float,
                    *, tm: int = 256, tn: int = 256) -> jax.Array:
    """Pallas equivalent of GaussianKernel.forward / get_covariance_matrix."""
    M, F = src_feats.shape
    N, F2 = tar_feats.shape
    assert F == F2, "feature dims must match"

    c = 1.0 / (2.0 * float(sigma) ** 2)
    amplitude = float(amplitude)
    if amplitude > 0.0:
        log_amp, amp_mul = math.log(amplitude), None
    else:
        log_amp, amp_mul = 0.0, amplitude

    # Precompute row squared norms once (hoisted out of the tiled grid),
    # already scaled by -c and laid out for broadcast inside the kernel.
    nx2 = (-c) * jnp.sum(src_feats.astype(jnp.float32) ** 2, axis=-1,
                         keepdims=True)                        # (M, 1)
    ny2 = (-c) * jnp.sum(tar_feats.astype(jnp.float32) ** 2, axis=-1)[None, :]  # (1, N)

    # Tile sizing: lane-dense output (tn multiple of 128), tm multiple of 8.
    tm = min(tm, _round_up(M, 8))
    tn = min(tn, _round_up(N, 128))
    itemsize = max(src_feats.dtype.itemsize, tar_feats.dtype.itemsize)

    def footprint(a, b):  # double-buffered inputs + outputs (bytes)
        return 2 * ((a * F + b * F) * itemsize + a * b * 4 + (a + b) * 4)

    budget = 24 * 1024 * 1024  # conservative: fits v7x scoped default with headroom
    while footprint(tm, tn) > budget and (tm > 8 or tn > 128):
        if tm >= tn and tm > 8:
            tm = max(8, tm // 2)
        elif tn > 128:
            tn = max(128, tn // 2)
        else:
            break

    Mp, Np = _round_up(M, tm), _round_up(N, tn)
    if Mp != M:
        src_feats = jnp.pad(src_feats, ((0, Mp - M), (0, 0)))
        nx2 = jnp.pad(nx2, ((0, Mp - M), (0, 0)))
    if Np != N:
        tar_feats = jnp.pad(tar_feats, ((0, Np - N), (0, 0)))
        ny2 = jnp.pad(ny2, ((0, 0), (0, Np - N)))

    grid = (Mp // tm, Np // tn)

    kernel = functools.partial(
        _gaussian_kernel_kernel,
        two_c=2.0 * c, log_amp=log_amp, amp_mul=amp_mul,
    )

    cost = pl.CostEstimate(
        flops=2 * Mp * Np * F,
        transcendentals=Mp * Np,
        bytes_accessed=itemsize * (Mp * F + Np * F) + 4 * Mp * Np,
    )

    vmem_limit = int(min(max(2 * footprint(tm, tn), 32 * 1024 * 1024),
                         64 * 1024 * 1024))

    out = pl.pallas_call(
        kernel,
        out_shape=jax.ShapeDtypeStruct((Mp, Np), jnp.float32),
        grid=grid,
        in_specs=[
            pl.BlockSpec((tm, F), lambda i, j: (i, 0)),   # src row-tile
            pl.BlockSpec((tn, F), lambda i, j: (j, 0)),   # tar row-tile
            pl.BlockSpec((tm, 1), lambda i, j: (i, 0)),   # -c*|x|^2 column
            pl.BlockSpec((1, tn), lambda i, j: (0, j)),   # -c*|y|^2 row
        ],
        out_specs=pl.BlockSpec((tm, tn), lambda i, j: (i, j)),
        compiler_params=pltpu.CompilerParams(
            dimension_semantics=("parallel", "parallel"),
            vmem_limit_bytes=vmem_limit,
        ),
        cost_estimate=cost,
    )(src_feats, tar_feats, nx2, ny2)

    return out[:M, :N]


def _reference(src_feats, tar_feats, amplitude, sigma):
    # Pure-JAX mirror of the PyTorch double-loop (vectorized).
    diff = src_feats[:, None, :] - tar_feats[None, :, :]
    d = jnp.linalg.norm(diff, axis=-1)
    return amplitude * jnp.exp(-1.0 / (2.0 * sigma ** 2) * d ** 2)


if __name__ == "__main__":
    key = jax.random.PRNGKey(0)
    k1, k2 = jax.random.split(key)

    # Module hyper-parameters (GaussianKernel.__init__ args), set deterministically.
    amplitude = 1.5
    sigma = 2.0

    # Small, deliberately non-tile-aligned shapes to exercise padding/slicing.
    src_batch, tar_batch, feat = 10, 12, 48
    src_feats = jax.random.normal(k1, (src_batch, feat), dtype=jnp.float32)
    tar_feats = jax.random.normal(k2, (tar_batch, feat), dtype=jnp.float32)

    out = gaussian_kernel(src_feats, tar_feats, amplitude, sigma)
    out = jax.block_until_ready(out)

    ref = _reference(src_feats, tar_feats, amplitude, sigma)
    assert out.shape == (src_batch, tar_batch)
    assert jnp.allclose(out, ref, atol=1e-5, rtol=1e-5), "mismatch vs reference"

    print("KERNEL_OK")
</pallas_src>

<mosaic_0001>
module attributes {stable_mosaic.version = 11 : i64} {
  func.func @_gaussian_kernel_kernel(%arg0: i32, %arg1: i32, %arg2: memref<16x48xf32, #tpu.memory_space<vmem>>, %arg3: memref<128x48xf32, #tpu.memory_space<vmem>>, %arg4: memref<16x1xf32, #tpu.memory_space<vmem>>, %arg5: memref<1x128xf32, #tpu.memory_space<vmem>>, %arg6: memref<16x128xf32, #tpu.memory_space<vmem>>) attributes {dimension_semantics = [#tpu.dimension_semantics<parallel>, #tpu.dimension_semantics<parallel>], iteration_bounds = array<i64: 1, 1>, scalar_prefetch = 0 : i64, scratch_operands = 0 : i64, tpu.core_type = #tpu.core_type<tc>, window_params = [{transform_indices = @transform_0, window_bounds = array<i64: 16, 48>}, {transform_indices = @transform_1, window_bounds = array<i64: 128, 48>}, {transform_indices = @transform_2, window_bounds = array<i64: 16, 1>}, {transform_indices = @transform_3, window_bounds = array<i64: 1, 128>}, {transform_indices = @transform_4, window_bounds = array<i64: 16, 128>}]} {
    %c0 = arith.constant 0 : index
    %c0_0 = arith.constant 0 : index
    %0 = vector.load %arg2[%c0, %c0_0] : memref<16x48xf32, #tpu.memory_space<vmem>>, vector<16x48xf32>
    %c0_1 = arith.constant 0 : index
    %c0_2 = arith.constant 0 : index
    %1 = vector.load %arg3[%c0_1, %c0_2] : memref<128x48xf32, #tpu.memory_space<vmem>>, vector<128x48xf32>
    %cst = arith.constant dense<0.000000e+00> : vector<16x128xf32>
    %2 = tpu.matmul %0, %1, %cst {dimension_numbers = #tpu.dot_dimension_numbers<[1], [1], [0], [0], [0, 0, 1, 0], [], []>} : vector<16x48xf32>, vector<128x48xf32>, vector<16x128xf32> -> vector<16x128xf32>
    %cst_3 = arith.constant 2.500000e-01 : f32
    %3 = vector.broadcast %cst_3 : f32 to vector<16x128xf32>
    %4 = arith.mulf %3, %2 : vector<16x128xf32>
    %c0_4 = arith.constant 0 : index
    %c0_5 = arith.constant 0 : index
    %5 = vector.load %arg4[%c0_4, %c0_5] : memref<16x1xf32, #tpu.memory_space<vmem>>, vector<16x1xf32>
    %6 = vector.broadcast %5 : vector<16x1xf32> to vector<16x128xf32>
    %7 = arith.addf %4, %6 : vector<16x128xf32>
    %c0_6 = arith.constant 0 : index
    %c0_7 = arith.constant 0 : index
    %8 = vector.load %arg5[%c0_6, %c0_7] : memref<1x128xf32, #tpu.memory_space<vmem>>, vector<1x128xf32>
    %9 = vector.broadcast %8 : vector<1x128xf32> to vector<16x128xf32>
    %10 = arith.addf %7, %9 : vector<16x128xf32>
    %cst_8 = arith.constant 0.405465096 : f32
    %11 = vector.broadcast %cst_8 : f32 to vector<16x128xf32>
    %12 = arith.addf %10, %11 : vector<16x128xf32>
    %cst_9 = arith.constant 0.405465096 : f32
    %13 = vector.broadcast %cst_9 : f32 to vector<16x128xf32>
    %14 = arith.minimumf %12, %13 : vector<16x128xf32>
    %15 = math.exp %14 : vector<16x128xf32>
    %c0_10 = arith.constant 0 : index
    %c0_11 = arith.constant 0 : index
    %16 = vector.load %arg6[%c0_10, %c0_11] : memref<16x128xf32, #tpu.memory_space<vmem>>, vector<16x128xf32>
    tpu.vector_store %arg6[%c0_10, %c0_11], %15 {strides = array<i32>} : memref<16x128xf32, #tpu.memory_space<vmem>>, vector<16x128xf32>,
    return
  }
  func.func @transform_0(%arg0: i32, %arg1: i32) -> (i32, i32) {
    %c0_i32 = arith.constant 0 : i32
    %c0_i32_0 = arith.constant 0 : i32
    return %arg0, %c0_i32 : i32, i32
  }
  func.func @transform_1(%arg0: i32, %arg1: i32) -> (i32, i32) {
    %c0_i32 = arith.constant 0 : i32
    %c0_i32_0 = arith.constant 0 : i32
    return %arg1, %c0_i32 : i32, i32
  }
  func.func @transform_2(%arg0: i32, %arg1: i32) -> (i32, i32) {
    %c0_i32 = arith.constant 0 : i32
    %c0_i32_0 = arith.constant 0 : i32
    return %arg0, %c0_i32 : i32, i32
  }
  func.func @transform_3(%arg0: i32, %arg1: i32) -> (i32, i32) {
    %c0_i32 = arith.constant 0 : i32
    %c0_i32_0 = arith.constant 0 : i32
    return %c0_i32, %arg1 : i32, i32
  }
  func.func @transform_4(%arg0: i32, %arg1: i32) -> (i32, i32) {
    %c0_i32 = arith.constant 0 : i32
    return %arg0, %arg1 : i32, i32
  }
}

</mosaic_0001>

<llo_original>
// kernel: tpu_custom_call.1
$region0: #{tpu_custom_call.1}
  #allocation0 [shape = 'u32[]', space=smem, size = 0x4, offset = 0x4, fixed_abs, tag = 'smem constant byte address 0x4 - core index']
  #allocation1 [shape = 'u32[144,128]{1,0:T(1,128)}', space=vmem, size = 0x12000, scoped, tag = 'internal scratch']
  %s0 = inlined_call_operand.vmem [shape: f32[16,48], index: 0, kind: input, shape index: {}]
  %s1 = inlined_call_operand.vmem [shape: f32[128,48], index: 1, kind: input, shape index: {}]
  %s2 = inlined_call_operand.vmem [shape: f32[16,1], index: 2, kind: input, shape index: {}]
  %s3 = inlined_call_operand.vmem [shape: f32[1,128], index: 3, kind: input, shape index: {}]
  %s4 = inlined_call_operand.hbm [shape: f32[16,128], index: 4, kind: output, shape index: {}]
  %s5 = sld [smem:[#allocation0]]
  $region26: #{tpu_custom_call.1} parent=0
    _
  %s7 = ssub.s32 1, %s5
  %s8 = scalar_select 0, %s7, %s5
  $region1: #{tpu_custom_call.1} parent=0
    #allocation2 [shape = 'u8[8192]{0}', space=vmem, size = 0x2000, scoped, tag = 'output window, operand 0, single buffered']
    #allocation3 [shape = 's32[1]{0}', space=sflag, size = 0x4, scoped, tag = 'scoped memory for tpu_custom_call.1']
    %9 = vsyncpa [#allocation3], 0
    // Predicated region
    $region2: #{tpu_custom_call.1} parent=1 // pred_check
      _
    $region3: #{tpu_custom_call.1} parent=1 // pred_check_branch
      %11 = sbr.rel (0) target = $region5
    $region4: #{tpu_custom_call.1} parent=1 // pred_region
      _
    $region5: #{tpu_custom_call.1} parent=1 // pred_fallthru
      _
    // Predicated region
    $region6: #{tpu_custom_call.1} parent=1 // pred_check
      _
    $region7: #{tpu_custom_call.1} parent=1 // pred_check_branch
      %13 = sbr.rel (0) target = $region9
    $region8: #{tpu_custom_call.1} parent=1 // pred_region
      _
    $region9: #{tpu_custom_call.1} parent=1 // pred_fallthru
      _
    // Predicated region
    $region10: #{tpu_custom_call.1} parent=1 // pred_check
      _
    $region11: #{tpu_custom_call.1} parent=1 // pred_check_branch
      %15 = sbr.rel (0) target = $region13
    $region12: #{tpu_custom_call.1} parent=1 // pred_region
      _
    $region13: #{tpu_custom_call.1} parent=1 // pred_fallthru
      _
    // Predicated region
    $region14: #{tpu_custom_call.1} parent=1 // pred_check
      _
    $region15: #{tpu_custom_call.1} parent=1 // pred_check_branch
      %17 = sbr.rel (0) target = $region17
    $region16: #{tpu_custom_call.1} parent=1 // pred_region
      _
    $region17: #{tpu_custom_call.1} parent=1 // pred_fallthru
      _
    %v18 = vld [vmem:[%s0] sm:$0xff]
    %v19 = vld [vmem:[%s0 + $0x8] sm:$0xff]
    %v20 = vld [vmem:[%s1] sm:$0xff]
    %v21 = vld [vmem:[%s1 + $0x8] sm:$0xff]
    %v22 = vld [vmem:[%s1 + $0x10] sm:$0xff]
    %v23 = vld [vmem:[%s1 + $0x18] sm:$0xff]
    %v24 = vld [vmem:[%s1 + $0x20] sm:$0xff]
    %v25 = vld [vmem:[%s1 + $0x28] sm:$0xff]
    %v26 = vld [vmem:[%s1 + $0x30] sm:$0xff]
    %v27 = vld [vmem:[%s1 + $0x38] sm:$0xff]
    %v28 = vld [vmem:[%s1 + $0x40] sm:$0xff]
    %v29 = vld [vmem:[%s1 + $0x48] sm:$0xff]
    %v30 = vld [vmem:[%s1 + $0x50] sm:$0xff]
    %v31 = vld [vmem:[%s1 + $0x58] sm:$0xff]
    %v32 = vld [vmem:[%s1 + $0x60] sm:$0xff]
    %v33 = vld [vmem:[%s1 + $0x68] sm:$0xff]
    %v34 = vld [vmem:[%s1 + $0x70] sm:$0xff]
    %v35 = vld [vmem:[%s1 + $0x78] sm:$0xff]
    %vm36 = vcmask 392192
    %v38 = vsel %vm36, %v18, 0
    %v41 = vsel %vm36, %v19, 0
    %v44 = vsel %vm36, %v20, 0
    %v47 = vsel %vm36, %v21, 0
    %v50 = vsel %vm36, %v22, 0
    %v53 = vsel %vm36, %v23, 0
    %v56 = vsel %vm36, %v24, 0
    %v59 = vsel %vm36, %v25, 0
    %v62 = vsel %vm36, %v26, 0
    %v65 = vsel %vm36, %v27, 0
    %v68 = vsel %vm36, %v28, 0
    %v71 = vsel %vm36, %v29, 0
    %v74 = vsel %vm36, %v30, 0
    %v77 = vsel %vm36, %v31, 0
    %v80 = vsel %vm36, %v32, 0
    %v83 = vsel %vm36, %v33, 0
    %v86 = vsel %vm36, %v34, 0
    %v89 = vsel %vm36, %v35, 0
    %91 = vmatprep.subr.mxu0 0.0
    %92 = vmatpush1.xpose.msra.mxu0 %v89
    %93 = vmatprep.subr.mxu0 0.0
    %94 = vmatpush1.xpose.msra.mxu0 %v86
    %95 = vmatprep.subr.mxu0 0.0
    %96 = vmatpush1.xpose.msra.mxu0 %v83
    %97 = vmatprep.subr.mxu0 0.0
    %98 = vmatpush1.xpose.msra.mxu0 %v80
    %99 = vmatprep.subr.mxu0 0.0
    %100 = vmatpush1.xpose.msra.mxu0 %v77
    %101 = vmatprep.subr.mxu0 0.0
    %102 = vmatpush1.xpose.msra.mxu0 %v74
    %103 = vmatprep.subr.mxu0 0.0
    %104 = vmatpush1.xpose.msra.mxu0 %v71
    %105 = vmatprep.subr.mxu0 0.0
    %106 = vmatpush1.xpose.msra.mxu0 %v68
    %107 = vmatprep.subr.mxu0 0.0
    %108 = vmatpush1.xpose.msra.mxu0 %v65
    %109 = vmatprep.subr.mxu0 0.0
    %110 = vmatpush1.xpose.msra.mxu0 %v62
    %111 = vmatprep.subr.mxu0 0.0
    %112 = vmatpush1.xpose.msra.mxu0 %v59
    %113 = vmatprep.subr.mxu0 0.0
    %114 = vmatpush1.xpose.msra.mxu0 %v56
    %115 = vmatprep.subr.mxu0 0.0
    %116 = vmatpush1.xpose.msra.mxu0 %v53
    %117 = vmatprep.subr.mxu0 0.0
    %118 = vmatpush1.xpose.msra.mxu0 %v50
    %119 = vmatprep.subr.mxu0 0.0
    %120 = vmatpush1.xpose.msra.mxu0 %v47
    %121 = vmatprep.subr.mxu0 0.0
    %122 = vmatpush1.xpose.msra.mxu0 %v44
    %123 = vmatprep.subr.mxu0 0.0
    %124 = vmatpush2.xpose.msra.mxu0 0.0
    %125 = vmatprep.subr.mxu0 0.0
    %126 = vmatpush2.xpose.msra.mxu0 0.0
    %127 = vmatprep.subr.mxu0 0.0
    %128 = vmatpush2.xpose.msra.mxu0 0.0
    %129 = vmatprep.subr.mxu0 0.0
    %130 = vmatpush2.xpose.msra.mxu0 0.0
    %131 = vmatprep.subr.mxu0 0.0
    %132 = vmatpush2.xpose.msra.mxu0 0.0
    %133 = vmatprep.subr.mxu0 0.0
    %134 = vmatpush2.xpose.msra.mxu0 0.0
    %135 = vmatprep.subr.mxu0 0.0
    %136 = vmatpush2.xpose.msra.mxu0 0.0
    %137 = vmatprep.subr.mxu0 0.0
    %138 = vmatpush2.xpose.msra.mxu0 0.0
    %139 = vmatprep.subr.mxu0 0.0
    %140 = vmatpush2.xpose.msra.mxu0 0.0
    %141 = vmatprep.subr.mxu0 0.0
    %142 = vmatpush2.xpose.msra.mxu0 0.0
    %143 = vmatprep.subr.mxu0 0.0
    %144 = vmatpush2.xpose.msra.mxu0 0.0
    %145 = vmatprep.subr.mxu0 0.0
    %146 = vmatpush2.xpose.msra.mxu0 0.0
    %147 = vmatprep.subr.mxu0 0.0
    %148 = vmatpush2.xpose.msra.mxu0 0.0
    %149 = vmatprep.subr.mxu0 0.0
    %150 = vmatpush2.xpose.msra.mxu0 0.0
    %151 = vmatprep.subr.mxu0 0.0
    %152 = vmatpush2.xpose.msra.mxu0 0.0
    %153 = vmatprep.subr.mxu0 0.0
    %154 = vmatpush2.xpose.msra.mxu0 0.0
    %155 = vmatprep.mubr.f32.mxu0 0.0
    %156 = vmatmul.mubr.f32.gmra.mxu0 %v38
    %v157 = vpop.f32.mrf.mxu0
    %v158 = vadd.f32 0.0, %v157
    %v159 = vpop.f32.mrf.mxu0
    %160 = vmatprep.mubr.f32.mxu0 0.0
    %161 = vmatmul.mubr.f32.gmra.mxu0 %v41
    %v162 = vpop.f32.mrf.mxu0
    %v163 = vadd.f32 0.0, %v162
    %v164 = vpop.f32.mrf.mxu0
    %165 = vdwg.mxu0
    %v166 = vmul.f32 %v158, 0.25
    %v167 = vmul.f32 %v163, 0.25
    %v168 = vld [vmem:[%s2] sm:$0xff]
    %v169 = vld [vmem:[%s2 + $0x8] sm:$0xff]
    %171 = vset.pattern.permute.xlu0 0
    %172 = vperm.xlu0 %171, %v168
    %v173 = vpop.permute.xlu0 %172
    %176 = vset.pattern.permute.xlu0 0
    %177 = vperm.xlu0 %176, %v169
    %v178 = vpop.permute.xlu0 %177
    %v180 = vadd.f32 %v166, %v173
    %v181 = vadd.f32 %v167, %v178
    %v182 = vld [vmem:[%s3] sm:$0x1]
    %v184 = vlaneseq
    %v185 = vshrl.u32 %v184, 7
    %v186 = vsub.s32 0, %v185
    %v187 = vrot.slane %v182, %v186
    %v189 = vadd.f32 %v180, %v187
    %v190 = vadd.f32 %v181, %v187
    %v191 = vadd.f32 %v189, 0.4054651
    %v192 = vadd.f32 %v190, 0.4054651
    %v193 = vmin.f32 %v191, 0.4054651
    %v194 = vmin.f32 %v192, 0.4054651
    %v195 = vmul.f32 %v193, 1.442695
    %v196 = vpow.pop %v195
    %v197 = vmul.f32 %v194, 1.442695
    %v198 = vpow.pop %v197
    %199 = vst [vmem:[#allocation2] sm:$0xff] %v196
    %200 = vst [vmem:[#allocation2 + $0x8] sm:$0xff] %v198
    // Predicated region
    $region18: #{tpu_custom_call.1} parent=1 // pred_check
      _
    $region19: #{tpu_custom_call.1} parent=1 // pred_check_branch
      %202 = sbr.rel (0) target = $region21
    $region20: #{tpu_custom_call.1} parent=1 // pred_region
      %s204 = ssub.s32 256, 256
      %205 = vsyncadd [#allocation3], %s204
      %s206 = sshll.u32 [#allocation2], 4
      %s207 = int_to_ptr.vmem [resolvable:$true] %s206
      %212 = dma.vmem_to_hbm [thread:$0]  %s207, 256, %s4, [#allocation3], 128, 128, 8
    $region21: #{tpu_custom_call.1} parent=1 // pred_fallthru
      _
    // Predicated region
    $region22: #{tpu_custom_call.1} parent=1 // pred_check
      _
    $region23: #{tpu_custom_call.1} parent=1 // pred_check_branch
      %214 = sbr.rel (0) target = $region25
    $region24: #{tpu_custom_call.1} parent=1 // pred_region
      %215 = dma.done [#allocation3], 256
    $region25: #{tpu_custom_call.1} parent=1 // pred_fallthru
      _
    %216 = vsyncpa [#allocation3], 1

</llo_original>
